<compile_context>
chip_gen: v7x
topology: tpu7x:2x2x1
jax: 0.10.0
libtpu: 0.0.40
codegen_flags: <defaults>
</compile_context>

<pallas_src>
import math

import jax
import jax.numpy as jnp
from jax.experimental import pallas as pl
from jax.experimental.pallas import tpu as pltpu

_LANES = 128
_SUBLANE = 8
_SUBLANE_MULTIPLE = 32          # friendly to f32(8)/bf16(16)/8-bit(32) sublane packing
_TARGET_TILE_BYTES = 4 << 20    # ~4 MiB per block: 85%+ HBM roofline, fits every gen
_MIN_PALLAS_BYTES = 2 << 20     # below this, the fused XLA add wins


def _add_pos_kernel(param_ref, x_ref, o_ref):
    # param_ref: (tile_rows, 128); x_ref / o_ref: (TB, tile_rows, 128).
    # Widening casts happen here (free VPU work on a mem-bound kernel); the
    # broadcast over the TB axis reuses the same param vregs.
    p = param_ref[...].astype(o_ref.dtype)
    o_ref[...] = x_ref[...].astype(o_ref.dtype) + p[None, :, :]


def _pick_tile_rows(rows: int, max_rows: int) -> int:
    """Row-tile size: full extent if it fits, else an exact divisor, else ragged."""
    if rows <= max_rows:
        return rows
    # Largest multiple-of-8 divisor of `rows` that is <= max_rows keeps every tile
    # unmasked; only accept it if it is not so small that step overhead dominates.
    d = (max_rows // _SUBLANE) * _SUBLANE
    floor = max(_SUBLANE, max_rows // 2)
    while d >= floor:
        if rows % d == 0:
            return d
        d -= _SUBLANE
    # No good divisor: sublane-friendly tile; only the final tile is masked.
    return max(_SUBLANE_MULTIPLE, (max_rows // _SUBLANE_MULTIPLE) * _SUBLANE_MULTIPLE)


def learnable_pos_emb_forward(
    param: jax.Array,
    x: jax.Array,
    *,
    min_pallas_bytes: int = _MIN_PALLAS_BYTES,
    target_tile_bytes: int = _TARGET_TILE_BYTES,
) -> jax.Array:
    """Computes `param + x`, broadcasting param over x's leading (batch) dims."""
    assert x.ndim >= param.ndim and x.shape[x.ndim - param.ndim:] == param.shape, (
        f"x shape {x.shape} must end with param shape {param.shape}")

    out_dtype = jnp.result_type(param.dtype, x.dtype)
    batch_shape = x.shape[: x.ndim - param.ndim]
    n = math.prod(param.shape)
    b = math.prod(batch_shape) if batch_shape else 1

    widest = max(jnp.dtype(param.dtype).itemsize,
                 jnp.dtype(x.dtype).itemsize,
                 jnp.dtype(out_dtype).itemsize)
    total_bytes = b * n * widest

    # Fallback: non-lane-dense slabs, degenerate sizes, or tiny inputs where the
    # custom-call launch overhead exceeds the fused XLA add.
    if n == 0 or b == 0 or n % _LANES != 0 or total_bytes < min_pallas_bytes:
        return param.astype(out_dtype) + x.astype(out_dtype)

    rows = n // _LANES
    # Lane-dense views in NATIVE dtypes (no wrapper-side convert / extra HBM pass).
    param2d = param.reshape(rows, _LANES)
    x3d = x.reshape(b, rows, _LANES)

    # Row tiling (sized by the widest dtype so the largest buffer obeys the target).
    max_rows = max(
        _SUBLANE_MULTIPLE,
        (target_tile_bytes // (_LANES * widest)) // _SUBLANE_MULTIPLE * _SUBLANE_MULTIPLE,
    )
    tile_rows = _pick_tile_rows(rows, max_rows)
    num_row_tiles = pl.cdiv(rows, tile_rows)

    # Batch packing: put ~target_tile_bytes of x/out into each grid step.
    per_batch_tile_bytes = tile_rows * _LANES * widest
    tb = max(1, min(b, target_tile_bytes // per_batch_tile_bytes))
    if num_row_tiles == 1 and b >= 2 and pl.cdiv(b, tb) < 2:
        tb = pl.cdiv(b, 2)  # leading parallel axis >= 2 so both v7x TCs get work
    num_batch_tiles = pl.cdiv(b, tb)

    if num_row_tiles >= 2:
        # Row tiles lead (megacore split); batch innermost so the param block index
        # is constant across consecutive steps and is not re-fetched per batch tile.
        grid = (num_row_tiles, num_batch_tiles)
        param_map = lambda r, bt: (r, 0)
        xo_map = lambda r, bt: (bt, r, 0)
    else:
        # Single row tile: param block index is constant anyway; batch tiles lead so
        # v7x megacore sharding sees an axis of extent >= 2.
        grid = (num_batch_tiles, num_row_tiles)
        param_map = lambda bt, r: (r, 0)
        xo_map = lambda bt, r: (bt, r, 0)

    # VMEM budget from the actual (double-buffered) block sizes, with headroom;
    # capped well under v7x's 64 MiB per-TC physical VMEM.
    param_block_bytes = tile_rows * _LANES * jnp.dtype(param.dtype).itemsize
    x_block_bytes = tb * tile_rows * _LANES * jnp.dtype(x.dtype).itemsize
    out_block_bytes = tb * tile_rows * _LANES * jnp.dtype(out_dtype).itemsize
    vmem_limit = 2 * (param_block_bytes + x_block_bytes + out_block_bytes) + (4 << 20)
    vmem_limit = min(max(vmem_limit, 16 << 20), 48 << 20)

    out3d = pl.pallas_call(
        _add_pos_kernel,
        out_shape=jax.ShapeDtypeStruct((b, rows, _LANES), out_dtype),
        grid_spec=pltpu.PrefetchScalarGridSpec(
            num_scalar_prefetch=0,
            grid=grid,
            in_specs=[
                pl.BlockSpec((tile_rows, _LANES), param_map),
                pl.BlockSpec((tb, tile_rows, _LANES), xo_map),
            ],
            out_specs=pl.BlockSpec((tb, tile_rows, _LANES), xo_map),
        ),
        compiler_params=pltpu.CompilerParams(
            dimension_semantics=("parallel", "parallel"),
            vmem_limit_bytes=vmem_limit,
        ),
    )(param2d, x3d)

    return out3d.reshape(x.shape)


if __name__ == "__main__":
    key = jax.random.PRNGKey(0)
    k1, k2, k3, k4, k5, k6, k7, k8 = jax.random.split(key, 8)

    # 1) Small module-consistent shape (batch=2, seq=8, hidden=32): below the size
    #    threshold -> fused XLA fallback path.
    B, S, D = 2, 8, 32
    param = jax.random.normal(k1, (S, D), dtype=jnp.float32)
    x = jax.random.normal(k2, (B, S, D), dtype=jnp.float32)
    out = jax.block_until_ready(learnable_pos_emb_forward(param, x))
    assert out.shape == x.shape
    assert jnp.allclose(out, param[None] + x, atol=1e-6), "fallback path mismatch"

    # 2) Same small shape forced through the Pallas path: exercises batch packing
    #    and the megacore-friendly (2, 1) grid.
    out = jax.block_until_ready(
        learnable_pos_emb_forward(param, x, min_pallas_bytes=0))
    assert jnp.allclose(out, param[None] + x, atol=1e-6), "pallas small-slab mismatch"

    # 3) Mixed dtypes (bf16 activations, f32 param): in-kernel widening cast,
    #    f32 output, TB=2 batch packing.
    B3, S3, D3 = 4, 16, 128
    param3 = jax.random.normal(k3, (S3, D3), dtype=jnp.float32)
    x3 = jax.random.normal(k4, (B3, S3, D3), dtype=jnp.bfloat16)
    out3 = jax.block_until_ready(
        learnable_pos_emb_forward(param3, x3, min_pallas_bytes=0))
    ref3 = param3[None] + x3.astype(jnp.float32)
    assert out3.dtype == jnp.float32
    assert jnp.allclose(out3, ref3, atol=1e-6), "mixed-dtype path mismatch"

    # 4) Ragged row tiling: tiny tile target forces 2 row tiles (32 + masked 8)
    #    and a (2, 3) grid — checks the masked-final-tile correctness concern.
    B4, S4, D4 = 3, 40, 128
    param4 = jax.random.normal(k5, (S4, D4), dtype=jnp.float32)
    x4 = jax.random.normal(k6, (B4, S4, D4), dtype=jnp.float32)
    out4 = jax.block_until_ready(
        learnable_pos_emb_forward(param4, x4, min_pallas_bytes=0,
                                  target_tile_bytes=32 * 128 * 4))
    assert jnp.allclose(out4, param4[None] + x4, atol=1e-6), "ragged-rows mismatch"

    # 5) rows not a multiple of 8 (full-extent row block) + ragged final batch tile.
    B5, S5, D5 = 3, 6, 64
    param5 = jax.random.normal(k7, (S5, D5), dtype=jnp.float32)
    x5 = jax.random.normal(k8, (B5, S5, D5), dtype=jnp.float32)
    out5 = jax.block_until_ready(
        learnable_pos_emb_forward(param5, x5, min_pallas_bytes=0))
    assert jnp.allclose(out5, param5[None] + x5, atol=1e-6), "ragged-batch mismatch"

    print("KERNEL_OK")
</pallas_src>

<mosaic_0001>
module attributes {stable_mosaic.version = 11 : i64} {
  func.func @_add_pos_kernel(%arg0: i32, %arg1: i32, %arg2: memref<2x128xf32, #tpu.memory_space<vmem>>, %arg3: memref<1x2x128xf32, #tpu.memory_space<vmem>>, %arg4: memref<1x2x128xf32, #tpu.memory_space<vmem>>) attributes {dimension_semantics = [#tpu.dimension_semantics<parallel>, #tpu.dimension_semantics<parallel>], iteration_bounds = array<i64: 2, 1>, scalar_prefetch = 0 : i64, scratch_operands = 0 : i64, tpu.core_type = #tpu.core_type<tc>, window_params = [{transform_indices = @transform_0, window_bounds = array<i64: 2, 128>}, {transform_indices = @transform_1, window_bounds = array<i64: 1, 2, 128>}, {transform_indices = @transform_2, window_bounds = array<i64: 1, 2, 128>}]} {
    %c0 = arith.constant 0 : index
    %c0_0 = arith.constant 0 : index
    %0 = vector.load %arg2[%c0, %c0_0] : memref<2x128xf32, #tpu.memory_space<vmem>>, vector<2x128xf32>
    %c0_1 = arith.constant 0 : index
    %c0_2 = arith.constant 0 : index
    %c0_3 = arith.constant 0 : index
    %1 = vector.load %arg3[%c0_1, %c0_2, %c0_3] : memref<1x2x128xf32, #tpu.memory_space<vmem>>, vector<1x2x128xf32>
    %2 = vector.shape_cast %0 : vector<2x128xf32> to vector<1x2x128xf32>
    %3 = arith.addf %1, %2 : vector<1x2x128xf32>
    %c0_4 = arith.constant 0 : index
    %c0_5 = arith.constant 0 : index
    %c0_6 = arith.constant 0 : index
    %4 = vector.load %arg4[%c0_4, %c0_5, %c0_6] : memref<1x2x128xf32, #tpu.memory_space<vmem>>, vector<1x2x128xf32>
    tpu.vector_store %arg4[%c0_4, %c0_5, %c0_6], %3 {strides = array<i32>} : memref<1x2x128xf32, #tpu.memory_space<vmem>>, vector<1x2x128xf32>,
    return
  }
  func.func @transform_0(%arg0: i32, %arg1: i32) -> (i32, i32) {
    %c0_i32 = arith.constant 0 : i32
    %c0_i32_0 = arith.constant 0 : i32
    return %arg1, %c0_i32 : i32, i32
  }
  func.func @transform_1(%arg0: i32, %arg1: i32) -> (i32, i32, i32) {
    %c0_i32 = arith.constant 0 : i32
    %c0_i32_0 = arith.constant 0 : i32
    return %arg0, %arg1, %c0_i32 : i32, i32, i32
  }
  func.func @transform_2(%arg0: i32, %arg1: i32) -> (i32, i32, i32) {
    %c0_i32 = arith.constant 0 : i32
    %c0_i32_0 = arith.constant 0 : i32
    return %arg0, %arg1, %c0_i32 : i32, i32, i32
  }
}

</mosaic_0001>

<llo_original>
// kernel: tpu_custom_call.1
$region0: #{tpu_custom_call.1}
  #allocation0 [shape = 'u32[]', space=smem, size = 0x4, offset = 0x4, fixed_abs, tag = 'smem constant byte address 0x4 - core index']
  #allocation1 [shape = 'u32[144,128]{1,0:T(1,128)}', space=vmem, size = 0x12000, scoped, tag = 'internal scratch']
  %s0 = inlined_call_operand.hbm [shape: f32[2,128], index: 0, kind: input, shape index: {}]
  %s1 = inlined_call_operand.hbm [shape: f32[2,2,128], index: 1, kind: input, shape index: {}]
  %s2 = inlined_call_operand.hbm [shape: f32[2,2,128], index: 2, kind: output, shape index: {}]
  %s3 = sld [smem:[#allocation0]]
  $region49: #{tpu_custom_call.1} parent=0
    _
  %s5 = ssub.s32 1, %s3
  %s6 = scalar_select 0, %s5, %s3
  $region1: #{tpu_custom_call.1} parent=0
    #allocation2 [shape = 'u8[1024]{0}', space=vmem, size = 0x400, scoped, tag = 'input window, operand 0, single buffered']
    #allocation3 [shape = 's32[2]{0}', space=sflag, size = 0x8, scoped, tag = 'scoped memory for tpu_custom_call.1']
    #allocation4 [shape = 's32[2]{0}', space=sflag, size = 0x8, scoped, tag = 'scoped memory for tpu_custom_call.1']
    #allocation5 [shape = 'u8[2048]{0}', space=vmem, size = 0x800, scoped, tag = 'input window, operand 1']
    #allocation6 [shape = 's32[2]{0}', space=sflag, size = 0x8, scoped, tag = 'scoped memory for tpu_custom_call.1']
    #allocation7 [shape = 'u8[2048]{0}', space=vmem, size = 0x800, scoped, tag = 'output window, operand 0']
    %7 = vsyncpa [#allocation3], 0
    %8 = vsyncpa [#allocation6], 0
    %s9 = scalar_lea.sflag [#allocation6], 1
    %10 = vsyncpa %s9, 0
    %11 = vsyncpa [#allocation4], 0
    %s12 = scalar_lea.sflag [#allocation4], 1
    %13 = vsyncpa %s12, 0
    loop: start=0, step=1, limit=4
    $region2: #{tpu_custom_call.1} parent=1 // loop_pre_header
      _
    $region3: #{tpu_custom_call.1} parent=1 // loop_header
      %s15 = sphi 0, %s19
      %p16 = scmp.ge.s32.totalorder %s15, 4
      %s22 = sphi 0, %s34
      %s23 = sphi 0, %s30
      %s24 = sphi 0, %s22
      %s25 = sphi 0, %s23
      %s26 = sphi 0, %s24
      %s27 = sphi 0, %s25
      %s37 = sphi 0, %s39
      %s40 = sphi 0, %s37
      %s41 = sphi 0, %s40
      %s57 = sphi 0, %s41
      %s65 = sphi 0, %s67
      %s68 = sphi 0, %s65
      %s69 = sphi 0, %s68
      %s85 = sphi 0, %s69
      %s93 = sphi 0, %s95
      %s96 = sphi 0, %s93
      %s97 = sphi 0, %s96
      %s113 = sphi 0, %s97
    $region4: #{tpu_custom_call.1} parent=1 // loop_header_branch
      %18 = sbr.rel (%p16) target = $region8
    $region5: #{tpu_custom_call.1} parent=1 // loop_body
      %s20 = ssub.s32 %s15, 1
      %s21 = ssub.s32 %s15, 2
      %s28 = sadd.s32 1, %s23
      %p29 = scmp.ge.s32.totalorder %s28, 1
      %s30 = scalar_select %p29, 0, %s28
      %s31 = sadd.s32 1, %s22
      %s32 = scalar_select %p29, %s31, %s22
      %p33 = scmp.ge.s32.totalorder %s32, 2
      %s34 = scalar_select %p33, 0, %s32
      %s35 = ssub.s32 %s23, %s30
      %p36 = scmp.eq.s32.totalorder %s35, 0
      %s38 = sadd.s32 %s37, 1
      %s39 = scalar_select %p36, %s37, %s38
      %p42 = pneg %p36
      %p43 = scmp.eq.s32.totalorder %s15, 1
      %p44 = por %p42, %p43
      %p45 = scmp.ne.s32.totalorder %s37, %s40
      %p46 = scmp.eq.s32.totalorder %s15, 0
      %p47 = por %p45, %p46
      %p48 = scmp.ne.s32.totalorder %s37, %s40
      %p49 = scmp.eq.s32.totalorder %s20, 1
      %p50 = por %p48, %p49
      %p51 = scmp.ne.s32.totalorder %s40, %s41
      %p52 = scmp.eq.s32.totalorder %s20, 0
      %p53 = por %p51, %p52
      %p54 = scmp.ne.s32.totalorder %s40, %s41
      %p55 = scmp.eq.s32.totalorder %s21, 1
      %p56 = por %p54, %p55
      %p58 = scmp.ne.s32.totalorder %s41, %s57
      %p59 = scmp.eq.s32.totalorder %s21, 0
      %p60 = por %p58, %p59
      %s61 = ssub.s32 %s22, %s34
      %s62 = ssub.s32 %s23, %s30
      %s63 = sor.u32 %s61, %s62
      %p64 = scmp.eq.s32.totalorder %s63, 0
      %s66 = sadd.s32 %s65, 1
      %s67 = scalar_select %p64, %s65, %s66
      %p70 = pneg %p64
      %p71 = scmp.eq.s32.totalorder %s15, 1
      %p72 = por %p70, %p71
      %p73 = scmp.ne.s32.totalorder %s65, %s68
      %p74 = scmp.eq.s32.totalorder %s15, 0
      %p75 = por %p73, %p74
      %p76 = scmp.ne.s32.totalorder %s65, %s68
      %p77 = scmp.eq.s32.totalorder %s20, 1
      %p78 = por %p76, %p77
      %p79 = scmp.ne.s32.totalorder %s68, %s69
      %p80 = scmp.eq.s32.totalorder %s20, 0
      %p81 = por %p79, %p80
      %p82 = scmp.ne.s32.totalorder %s68, %s69
      %p83 = scmp.eq.s32.totalorder %s21, 1
      %p84 = por %p82, %p83
      %p86 = scmp.ne.s32.totalorder %s69, %s85
      %p87 = scmp.eq.s32.totalorder %s21, 0
      %p88 = por %p86, %p87
      %s89 = ssub.s32 %s22, %s34
      %s90 = ssub.s32 %s23, %s30
      %s91 = sor.u32 %s89, %s90
      %p92 = scmp.eq.s32.totalorder %s91, 0
      %s94 = sadd.s32 %s93, 1
      %s95 = scalar_select %p92, %s93, %s94
      %p98 = pneg %p92
      %p99 = scmp.eq.s32.totalorder %s15, 1
      %p100 = por %p98, %p99
      %p101 = scmp.ne.s32.totalorder %s93, %s96
      %p102 = scmp.eq.s32.totalorder %s15, 0
      %p103 = por %p101, %p102
      %p104 = scmp.ne.s32.totalorder %s93, %s96
      %p105 = scmp.eq.s32.totalorder %s20, 1
      %p106 = por %p104, %p105
      %p107 = scmp.ne.s32.totalorder %s96, %s97
      %p108 = scmp.eq.s32.totalorder %s20, 0
      %p109 = por %p107, %p108
      %p110 = scmp.ne.s32.totalorder %s96, %s97
      %p111 = scmp.eq.s32.totalorder %s21, 1
      %p112 = por %p110, %p111
      %p114 = scmp.ne.s32.totalorder %s97, %s113
      %p115 = scmp.eq.s32.totalorder %s21, 0
      %p116 = por %p114, %p115
      %p117 = scmp.le.s32.totalorder 1, %s15
      %p118 = scmp.lt.s32.totalorder %s15, 3
      %p119 = pnand %p117, %p118
      %p120 = pneg %p119
      // Predicated region
      $region9: #{tpu_custom_call.1} parent=5 // pred_check
        _
      $region10: #{tpu_custom_call.1} parent=5 // pred_check_branch
        %122 = sbr.rel (%p119) target = $region12
      $region11: #{tpu_custom_call.1} parent=5 // pred_region
        %s123 = ssub.s32 %s15, 1
        // Predicated region
        $region13: #{tpu_custom_call.1} parent=11 // pred_check
          %p124 = pneg %p53
        $region14: #{tpu_custom_call.1} parent=11 // pred_check_branch
          %126 = sbr.rel (%p124) target = $region16
        $region15: #{tpu_custom_call.1} parent=11 // pred_region
          %s128 = ssub.s32 32, 32
          %129 = vsyncadd [#allocation3], %s128
          %s130 = smul.addr %s25, 32
          %s131 = scalar_lea.hbm %s0, %s130
          %s133 = sshll.u32 [#allocation2], 4
          %s134 = int_to_ptr.vmem [resolvable:$true] %s133
          %136 = dma.hbm_to_vmem [thread:$0]  %s131, 32, %s134, [#allocation3]
        $region16: #{tpu_custom_call.1} parent=11 // pred_fallthru
          _
      $region12: #{tpu_custom_call.1} parent=5 // pred_fallthru
        _
      %p137 = scmp.lt.s32.totalorder %s15, 2
      // Predicated region
      $region17: #{tpu_custom_call.1} parent=5 // pred_check
        %p138 = pneg %p137
      $region18: #{tpu_custom_call.1} parent=5 // pred_check_branch
        %140 = sbr.rel (%p138) target = $region20
      $region19: #{tpu_custom_call.1} parent=5 // pred_region
        // Predicated region
        $region21: #{tpu_custom_call.1} parent=19 // pred_check
          %p141 = pneg %p75
        $region22: #{tpu_custom_call.1} parent=19 // pred_check_branch
          %143 = sbr.rel (%p141) target = $region24
        $region23: #{tpu_custom_call.1} parent=19 // pred_region
          %s144 = sand.u32 %s65, 1
          %s145 = scalar_lea.sflag [#allocation6], %s144
          %s146 = sand.u32 %s65, 1
          %s147 = smul.addr %s146, 2
          %s148 = scalar_lea.vmem [#allocation5], %s147
          %s150 = ssub.s32 32, 32
          %151 = vsyncadd %s145, %s150
          %s152 = sadd.s32 %s23, %s22
          %s153 = smul.addr %s152, 32
          %s154 = scalar_lea.hbm %s1, %s153
          %s156 = sshll.u32 %s148, 4
          %s157 = int_to_ptr.vmem [resolvable:$true] %s156
          %159 = dma.hbm_to_vmem [thread:$0]  %s154, 32, %s157, %s145
        $region24: #{tpu_custom_call.1} parent=19 // pred_fallthru
          _
      $region20: #{tpu_custom_call.1} parent=5 // pred_fallthru
        _
      %p160 = scmp.le.s32.totalorder 1, %s15
      %p161 = scmp.lt.s32.totalorder %s15, 3
      %p162 = pnand %p160, %p161
      %p163 = pneg %p162
      // Predicated region
      $region25: #{tpu_custom_call.1} parent=5 // pred_check
        _
      $region26: #{tpu_custom_call.1} parent=5 // pred_check_branch
        %165 = sbr.rel (%p162) target = $region28
      $region27: #{tpu_custom_call.1} parent=5 // pred_region
        %s166 = ssub.s32 %s15, 1
        // Predicated region
        $region29: #{tpu_custom_call.1} parent=27 // pred_check
          %p167 = pneg %p53
        $region30: #{tpu_custom_call.1} parent=27 // pred_check_branch
          %169 = sbr.rel (%p167) target = $region32
        $region31: #{tpu_custom_call.1} parent=27 // pred_region
          %170 = dma.done [#allocation3], 32
        $region32: #{tpu_custom_call.1} parent=27 // pred_fallthru
          _
        %s171 = sand.u32 %s68, 1
        %s172 = scalar_lea.sflag [#allocation6], %s171
        %s173 = sand.u32 %s68, 1
        %s174 = smul.addr %s173, 2
        %s175 = scalar_lea.vmem [#allocation5], %s174
        // Predicated region
        $region33: #{tpu_custom_call.1} parent=27 // pred_check
          %p176 = pneg %p81
        $region34: #{tpu_custom_call.1} parent=27 // pred_check_branch
          %178 = sbr.rel (%p176) target = $region36
        $region35: #{tpu_custom_call.1} parent=27 // pred_region
          %179 = dma.done %s172, 32
        $region36: #{tpu_custom_call.1} parent=27 // pred_fallthru
          _
        %p180 = pneg %p53
        %p181 = pneg %p50
        %s182 = sand.u32 %s68, 1
        %s183 = scalar_lea.sflag [#allocation6], %s182
        %s184 = sand.u32 %s68, 1
        %s185 = smul.addr %s184, 2
        %s186 = scalar_lea.vmem [#allocation5], %s185
        %p187 = pneg %p81
        %p188 = pneg %p78
        %p189 = pneg %p109
        %p190 = pneg %p106
        %s191 = sand.u32 %s96, 1
        %s192 = scalar_lea.sflag [#allocation4], %s191
        %s193 = sand.u32 %s96, 1
        %s194 = smul.addr %s193, 2
        %s195 = scalar_lea.vmem [#allocation7], %s194
        %v196 = vld [vmem:[#allocation2] sm:$0x3]
        %v197 = vld [vmem:[%s175] sm:$0x3]
        %v198 = vadd.f32 %v197, %v196
        %199 = vst [vmem:[%s195] sm:$0x3] %v198
        %s200 = sand.u32 %s96, 1
        %s201 = scalar_lea.sflag [#allocation4], %s200
        %s202 = sand.u32 %s96, 1
        %s203 = smul.addr %s202, 2
        %s204 = scalar_lea.vmem [#allocation7], %s203
        // Predicated region
        $region37: #{tpu_custom_call.1} parent=27 // pred_check
          %p205 = pneg %p106
        $region38: #{tpu_custom_call.1} parent=27 // pred_check_branch
          %207 = sbr.rel (%p205) target = $region40
        $region39: #{tpu_custom_call.1} parent=27 // pred_region
          %s209 = ssub.s32 32, 32
          %210 = vsyncadd %s201, %s209
          %s211 = sadd.s32 %s25, %s24
          %s212 = smul.addr %s211, 32
          %s213 = scalar_lea.hbm %s2, %s212
          %s215 = sshll.u32 %s204, 4
          %s216 = int_to_ptr.vmem [resolvable:$true] %s215
          %218 = dma.vmem_to_hbm [thread:$0]  %s216, 32, %s213, %s201
        $region40: #{tpu_custom_call.1} parent=27 // pred_fallthru
          _
      $region28: #{tpu_custom_call.1} parent=5 // pred_fallthru
        _
      %p219 = scmp.le.s32.totalorder 2, %s15
      // Predicated region
      $region41: #{tpu_custom_call.1} parent=5 // pred_check
        %p220 = pneg %p219
      $region42: #{tpu_custom_call.1} parent=5 // pred_check_branch
        %222 = sbr.rel (%p220) target = $region44
      $region43: #{tpu_custom_call.1} parent=5 // pred_region
        %s223 = ssub.s32 %s15, 2
        // Predicated region
        $region45: #{tpu_custom_call.1} parent=43 // pred_check
          %p224 = pneg %p112
        $region46: #{tpu_custom_call.1} parent=43 // pred_check_branch
          %226 = sbr.rel (%p224) target = $region48
        $region47: #{tpu_custom_call.1} parent=43 // pred_region
          %s227 = sand.u32 %s97, 1
          %s228 = scalar_lea.sflag [#allocation4], %s227
          %s229 = sand.u32 %s97, 1
          %s230 = smul.addr %s229, 2
          %s231 = scalar_lea.vmem [#allocation7], %s230
          %232 = dma.done %s228, 32
        $region48: #{tpu_custom_call.1} parent=43 // pred_fallthru
          _
      $region44: #{tpu_custom_call.1} parent=5 // pred_fallthru
        _
    $region6: #{tpu_custom_call.1} parent=1 // loop_footer
      %s19 = sadd.s32 1, %s15
    $region7: #{tpu_custom_call.1} parent=1 // loop_footer_branch
      %14 = sbr.rel target = $region3
    $region8: #{tpu_custom_call.1} parent=1 // loop_exit
      _
    %233 = vsyncpa [#allocation3], 1
    %s234 = scalar_lea.sflag [#allocation3], 1
    %235 = vsyncpa %s234, 1
    %236 = vsyncpa [#allocation6], 1
    %s237 = scalar_lea.sflag [#allocation6], 1
    %238 = vsyncpa %s237, 1
    %239 = vsyncpa [#allocation4], 1
    %s240 = scalar_lea.sflag [#allocation4], 1
    %241 = vsyncpa %s240, 1

</llo_original>
